<compile_context>
chip_gen: v7x
topology: tpu7x:2x2x1
jax: 0.10.0
libtpu: 0.0.40
codegen_flags: <defaults>
</compile_context>

<pallas_src>
import jax
import jax.numpy as jnp
from jax.experimental import pallas as pl
from jax.experimental.pallas import tpu as pltpu


def _fwd_kernel(adj_ref, x_ref, wg_t_ref, bg_ref, hpre_ref, stats_ref):
    """Per batch-block: adj@x (batched), fused GCN linear, partial BN stats."""
    BB, N, Cin = x_ref.shape
    Cout = wg_t_ref.shape[1]

    adj = adj_ref[...]                                   # (BB, N, N)
    x = x_ref[...]                                       # (BB, N, Cin)

    # Batched graph aggregation on the MXU, accumulate in f32.
    ax = jnp.einsum('bij,bjc->bic', adj, x,
                    preferred_element_type=jnp.float32)  # (BB, N, Cin) f32
    ax = ax.astype(wg_t_ref.dtype)                       # keep MXU in operand dtype

    # One fused (BB*N, Cin) @ (Cin, Cout) matmul for the whole block.
    ax2 = ax.reshape(BB * N, Cin)
    h2 = jnp.dot(ax2, wg_t_ref[...],
                 preferred_element_type=jnp.float32) + bg_ref[...]   # (BB*N, Cout) f32

    hpre_ref[...] = h2.reshape(BB, N, Cout)

    # Per-block partial statistics (own output block -> batch axis stays "parallel").
    stats_ref[0, 0:1, :] = jnp.sum(h2, axis=0, keepdims=True)
    stats_ref[0, 1:2, :] = jnp.sum(h2 * h2, axis=0, keepdims=True)


def _bn_relu_res_kernel(scale_ref, shift_ref, wr_t_ref, br_ref,
                        x_ref, hpre_ref, out_ref):
    """Per batch-block: folded BN (scale/shift), ReLU, recomputed residual, add."""
    BB, N, Cin = x_ref.shape
    Cout = out_ref.shape[2]

    # Residual linear recomputed here (cheap on the MXU) instead of a
    # (B, N, Cout) HBM round-trip from kernel 1.
    x2 = x_ref[...].reshape(BB * N, Cin)
    r = jnp.dot(x2, wr_t_ref[...],
                preferred_element_type=jnp.float32) + br_ref[...]    # (BB*N, Cout)

    h2 = hpre_ref[...].reshape(BB * N, Cout)
    hn = h2 * scale_ref[...] + shift_ref[...]
    out_ref[...] = (jnp.maximum(hn, 0.0) + r).reshape(BB, N, Cout)


def graph_conv_block(x, adj, wg, bg, wr, br, gamma, beta,
                     eps=1e-5, block_b=8, use_bf16=False):
    """x: (B, N, Cin), adj: (B, N, N), wg/wr: (Cout, Cin) PyTorch-style weights."""
    B, N, Cin = x.shape
    Cout = wg.shape[0]

    # Largest divisor of B that is <= block_b samples per grid step.
    BB = 1
    for d in range(1, min(B, block_b) + 1):
        if B % d == 0:
            BB = d
    nblk = B // BB

    # TODO(synk): for large N, add a second grid axis tiling the adj contraction
    # (size tiles for v7x's 64 MiB VMEM, not v6e's 128 MiB) instead of full (N,N) blocks.

    compute_dtype = jnp.bfloat16 if use_bf16 else jnp.float32
    adj_c = jnp.asarray(adj).astype(compute_dtype)
    x_c = jnp.asarray(x).astype(compute_dtype)
    wg_t = jnp.asarray(wg, jnp.float32).T.astype(compute_dtype)       # (Cin, Cout)
    wr_t = jnp.asarray(wr, jnp.float32).T.astype(compute_dtype)       # (Cin, Cout)
    bg2 = jnp.asarray(bg, jnp.float32).reshape(1, Cout)
    br2 = jnp.asarray(br, jnp.float32).reshape(1, Cout)

    hpre, pstats = pl.pallas_call(
        _fwd_kernel,
        out_shape=(
            jax.ShapeDtypeStruct((B, N, Cout), jnp.float32),          # h pre-BN
            jax.ShapeDtypeStruct((nblk, 2, Cout), jnp.float32),       # partial stats
        ),
        grid_spec=pltpu.PrefetchScalarGridSpec(
            num_scalar_prefetch=0,
            grid=(nblk,),
            in_specs=[
                pl.BlockSpec((BB, N, N), lambda i: (i, 0, 0)),        # adj
                pl.BlockSpec((BB, N, Cin), lambda i: (i, 0, 0)),      # x
                pl.BlockSpec((Cin, Cout), lambda i: (0, 0)),          # wg^T
                pl.BlockSpec((1, Cout), lambda i: (0, 0)),            # bg
            ],
            out_specs=[
                pl.BlockSpec((BB, N, Cout), lambda i: (i, 0, 0)),     # h pre-BN
                pl.BlockSpec((1, 2, Cout), lambda i: (i, 0, 0)),      # per-block stats
            ],
        ),
        compiler_params=pltpu.CompilerParams(
            dimension_semantics=("parallel",)),                       # multi-TC safe
    )(adj_c, x_c, wg_t, bg2)

    # Tiny (nblk, 2, Cout) -> (Cout,) reduction + BN folding; negligible vs kernel traffic.
    stats = jnp.sum(pstats, axis=0)                                   # (2, Cout)
    count = float(B * N)
    mean = stats[0] / count
    var = jnp.maximum(stats[1] / count - mean * mean, 0.0)            # biased, clamped
    inv = jax.lax.rsqrt(var + eps)
    g32 = jnp.asarray(gamma, jnp.float32)
    b32 = jnp.asarray(beta, jnp.float32)
    scale = (g32 * inv).reshape(1, Cout)
    shift = (b32 - mean * g32 * inv).reshape(1, Cout)

    out = pl.pallas_call(
        _bn_relu_res_kernel,
        out_shape=jax.ShapeDtypeStruct((B, N, Cout), jnp.float32),
        grid_spec=pltpu.PrefetchScalarGridSpec(
            num_scalar_prefetch=0,
            grid=(nblk,),
            in_specs=[
                pl.BlockSpec((1, Cout), lambda i: (0, 0)),            # scale
                pl.BlockSpec((1, Cout), lambda i: (0, 0)),            # shift
                pl.BlockSpec((Cin, Cout), lambda i: (0, 0)),          # wr^T
                pl.BlockSpec((1, Cout), lambda i: (0, 0)),            # br
                pl.BlockSpec((BB, N, Cin), lambda i: (i, 0, 0)),      # x
                pl.BlockSpec((BB, N, Cout), lambda i: (i, 0, 0)),     # h pre-BN
            ],
            out_specs=pl.BlockSpec((BB, N, Cout), lambda i: (i, 0, 0)),
        ),
        compiler_params=pltpu.CompilerParams(
            dimension_semantics=("parallel",)),
        input_output_aliases={5: 0},                                  # out reuses hpre buffer
    )(scale, shift, wr_t, br2, x_c, hpre)
    return out


def _reference(x, adj, wg, bg, wr, br, gamma, beta, eps=1e-5):
    """Pure-JAX reference matching PyTorch training-mode forward."""
    h = jnp.einsum('bij,bjc->bic', adj, x)
    h = h @ wg.T + bg
    mean = h.mean(axis=(0, 1))
    var = h.var(axis=(0, 1))                 # biased variance (training-mode BN)
    hn = (h - mean) / jnp.sqrt(var + eps) * gamma + beta
    hn = jnp.maximum(hn, 0.0)
    res = x @ wr.T + br
    return hn + res


if __name__ == "__main__":
    # Lane-dense Cout (=128) so kernel stores are unmasked; shapes stay small.
    B, N, Cin, Cout = 2, 16, 32, 128

    key = jax.random.PRNGKey(0)
    kx, ka, kwg, kbg, kwr, kbr, kg, kb = jax.random.split(key, 8)

    x = jax.random.normal(kx, (B, N, Cin), dtype=jnp.float32)
    adj = jax.random.uniform(ka, (B, N, N), dtype=jnp.float32)

    lim = 1.0 / (Cin ** 0.5)
    wg = jax.random.uniform(kwg, (Cout, Cin), minval=-lim, maxval=lim, dtype=jnp.float32)
    bg = jax.random.uniform(kbg, (Cout,), minval=-lim, maxval=lim, dtype=jnp.float32)
    if Cin != Cout:
        wr = jax.random.uniform(kwr, (Cout, Cin), minval=-lim, maxval=lim, dtype=jnp.float32)
        br = jax.random.uniform(kbr, (Cout,), minval=-lim, maxval=lim, dtype=jnp.float32)
    else:
        wr = jnp.eye(Cout, dtype=jnp.float32)     # Identity residual (exact under matmul)
        br = jnp.zeros((Cout,), jnp.float32)
    gamma = 1.0 + 0.1 * jax.random.normal(kg, (Cout,), dtype=jnp.float32)
    beta = 0.1 * jax.random.normal(kb, (Cout,), dtype=jnp.float32)

    fn = jax.jit(graph_conv_block)
    out = fn(x, adj, wg, bg, wr, br, gamma, beta)
    out = jax.block_until_ready(out)

    ref = _reference(x, adj, wg, bg, wr, br, gamma, beta)
    assert out.shape == (B, N, Cout)
    max_err = float(jnp.max(jnp.abs(out - ref)))
    assert jnp.allclose(out, ref, atol=2e-4, rtol=2e-4), max_err

    print("KERNEL_OK")
</pallas_src>

<mosaic_0001>
module attributes {stable_mosaic.version = 11 : i64} {
  func.func @_bn_relu_res_kernel(%arg0: i32, %arg1: memref<1x128xf32, #tpu.memory_space<vmem>>, %arg2: memref<1x128xf32, #tpu.memory_space<vmem>>, %arg3: memref<32x128xf32, #tpu.memory_space<vmem>>, %arg4: memref<1x128xf32, #tpu.memory_space<vmem>>, %arg5: memref<2x16x32xf32, #tpu.memory_space<vmem>>, %arg6: memref<2x16x128xf32, #tpu.memory_space<vmem>>, %arg7: memref<2x16x128xf32, #tpu.memory_space<vmem>>) attributes {dimension_semantics = [#tpu.dimension_semantics<parallel>], iteration_bounds = array<i64: 1>, scalar_prefetch = 0 : i64, scratch_operands = 0 : i64, tpu.core_type = #tpu.core_type<tc>, window_params = [{pipeline_mode = #tpu.pipeline_mode<synchronous>, transform_indices = @transform_0, window_bounds = array<i64: 1, 128>}, {pipeline_mode = #tpu.pipeline_mode<synchronous>, transform_indices = @transform_1, window_bounds = array<i64: 1, 128>}, {pipeline_mode = #tpu.pipeline_mode<synchronous>, transform_indices = @transform_2, window_bounds = array<i64: 32, 128>}, {pipeline_mode = #tpu.pipeline_mode<synchronous>, transform_indices = @transform_3, window_bounds = array<i64: 1, 128>}, {transform_indices = @transform_4, window_bounds = array<i64: 2, 16, 32>}, {transform_indices = @transform_5, window_bounds = array<i64: 2, 16, 128>}, {transform_indices = @transform_6, window_bounds = array<i64: 2, 16, 128>}]} {
    %c0 = arith.constant 0 : index
    %c0_0 = arith.constant 0 : index
    %c0_1 = arith.constant 0 : index
    %0 = vector.load %arg5[%c0, %c0_0, %c0_1] : memref<2x16x32xf32, #tpu.memory_space<vmem>>, vector<2x16x32xf32>
    %1 = vector.shape_cast %0 : vector<2x16x32xf32> to vector<32x32xf32>
    %c0_2 = arith.constant 0 : index
    %c0_3 = arith.constant 0 : index
    %2 = vector.load %arg3[%c0_2, %c0_3] : memref<32x128xf32, #tpu.memory_space<vmem>>, vector<32x128xf32>
    %cst = arith.constant dense<0.000000e+00> : vector<32x128xf32>
    %3 = tpu.matmul %1, %2, %cst {dimension_numbers = #tpu.dot_dimension_numbers<[1], [0], [0], [1], [0, 0, 1, 1], [], []>} : vector<32x32xf32>, vector<32x128xf32>, vector<32x128xf32> -> vector<32x128xf32>
    %c0_4 = arith.constant 0 : index
    %c0_5 = arith.constant 0 : index
    %4 = vector.load %arg4[%c0_4, %c0_5] : memref<1x128xf32, #tpu.memory_space<vmem>>, vector<1x128xf32>
    %5 = vector.broadcast %4 : vector<1x128xf32> to vector<32x128xf32>
    %6 = arith.addf %3, %5 : vector<32x128xf32>
    %c0_6 = arith.constant 0 : index
    %c0_7 = arith.constant 0 : index
    %c0_8 = arith.constant 0 : index
    %7 = vector.load %arg6[%c0_6, %c0_7, %c0_8] : memref<2x16x128xf32, #tpu.memory_space<vmem>>, vector<2x16x128xf32>
    %8 = vector.shape_cast %7 : vector<2x16x128xf32> to vector<32x128xf32>
    %c0_9 = arith.constant 0 : index
    %c0_10 = arith.constant 0 : index
    %9 = vector.load %arg1[%c0_9, %c0_10] : memref<1x128xf32, #tpu.memory_space<vmem>>, vector<1x128xf32>
    %10 = vector.broadcast %9 : vector<1x128xf32> to vector<32x128xf32>
    %11 = arith.mulf %8, %10 : vector<32x128xf32>
    %c0_11 = arith.constant 0 : index
    %c0_12 = arith.constant 0 : index
    %12 = vector.load %arg2[%c0_11, %c0_12] : memref<1x128xf32, #tpu.memory_space<vmem>>, vector<1x128xf32>
    %13 = vector.broadcast %12 : vector<1x128xf32> to vector<32x128xf32>
    %14 = arith.addf %11, %13 : vector<32x128xf32>
    %cst_13 = arith.constant 0.000000e+00 : f32
    %15 = vector.broadcast %cst_13 : f32 to vector<32x128xf32>
    %16 = arith.maximumf %14, %15 : vector<32x128xf32>
    %17 = arith.addf %16, %6 : vector<32x128xf32>
    %18 = vector.shape_cast %17 : vector<32x128xf32> to vector<2x16x128xf32>
    %c0_14 = arith.constant 0 : index
    %c0_15 = arith.constant 0 : index
    %c0_16 = arith.constant 0 : index
    %19 = vector.load %arg7[%c0_14, %c0_15, %c0_16] : memref<2x16x128xf32, #tpu.memory_space<vmem>>, vector<2x16x128xf32>
    tpu.vector_store %arg7[%c0_14, %c0_15, %c0_16], %18 {strides = array<i32>} : memref<2x16x128xf32, #tpu.memory_space<vmem>>, vector<2x16x128xf32>,
    return
  }
  func.func @transform_0(%arg0: i32) -> (i32, i32) {
    %c0_i32 = arith.constant 0 : i32
    %c0_i32_0 = arith.constant 0 : i32
    %c0_i32_1 = arith.constant 0 : i32
    return %c0_i32, %c0_i32_0 : i32, i32
  }
  func.func @transform_1(%arg0: i32) -> (i32, i32) {
    %c0_i32 = arith.constant 0 : i32
    %c0_i32_0 = arith.constant 0 : i32
    %c0_i32_1 = arith.constant 0 : i32
    return %c0_i32, %c0_i32_0 : i32, i32
  }
  func.func @transform_2(%arg0: i32) -> (i32, i32) {
    %c0_i32 = arith.constant 0 : i32
    %c0_i32_0 = arith.constant 0 : i32
    %c0_i32_1 = arith.constant 0 : i32
    return %c0_i32, %c0_i32_0 : i32, i32
  }
  func.func @transform_3(%arg0: i32) -> (i32, i32) {
    %c0_i32 = arith.constant 0 : i32
    %c0_i32_0 = arith.constant 0 : i32
    %c0_i32_1 = arith.constant 0 : i32
    return %c0_i32, %c0_i32_0 : i32, i32
  }
  func.func @transform_4(%arg0: i32) -> (i32, i32, i32) {
    %c0_i32 = arith.constant 0 : i32
    %c0_i32_0 = arith.constant 0 : i32
    %c0_i32_1 = arith.constant 0 : i32
    return %arg0, %c0_i32, %c0_i32_0 : i32, i32, i32
  }
  func.func @transform_5(%arg0: i32) -> (i32, i32, i32) {
    %c0_i32 = arith.constant 0 : i32
    %c0_i32_0 = arith.constant 0 : i32
    %c0_i32_1 = arith.constant 0 : i32
    return %arg0, %c0_i32, %c0_i32_0 : i32, i32, i32
  }
  func.func @transform_6(%arg0: i32) -> (i32, i32, i32) {
    %c0_i32 = arith.constant 0 : i32
    %c0_i32_0 = arith.constant 0 : i32
    %c0_i32_1 = arith.constant 0 : i32
    return %arg0, %c0_i32, %c0_i32_0 : i32, i32, i32
  }
}

module attributes {stable_mosaic.version = 11 : i64} {
  func.func @_fwd_kernel(%arg0: i32, %arg1: memref<2x16x16xf32, #tpu.memory_space<vmem>>, %arg2: memref<2x16x32xf32, #tpu.memory_space<vmem>>, %arg3: memref<32x128xf32, #tpu.memory_space<vmem>>, %arg4: memref<1x128xf32, #tpu.memory_space<vmem>>, %arg5: memref<2x16x128xf32, #tpu.memory_space<vmem>>, %arg6: memref<1x2x128xf32, #tpu.memory_space<vmem>>) attributes {dimension_semantics = [#tpu.dimension_semantics<parallel>], iteration_bounds = array<i64: 1>, scalar_prefetch = 0 : i64, scratch_operands = 0 : i64, tpu.core_type = #tpu.core_type<tc>, window_params = [{transform_indices = @transform_0, window_bounds = array<i64: 2, 16, 16>}, {transform_indices = @transform_1, window_bounds = array<i64: 2, 16, 32>}, {pipeline_mode = #tpu.pipeline_mode<synchronous>, transform_indices = @transform_2, window_bounds = array<i64: 32, 128>}, {pipeline_mode = #tpu.pipeline_mode<synchronous>, transform_indices = @transform_3, window_bounds = array<i64: 1, 128>}, {transform_indices = @transform_4, window_bounds = array<i64: 2, 16, 128>}, {transform_indices = @transform_5, window_bounds = array<i64: 1, 2, 128>}]} {
    %c0 = arith.constant 0 : index
    %c0_0 = arith.constant 0 : index
    %c0_1 = arith.constant 0 : index
    %0 = vector.load %arg1[%c0, %c0_0, %c0_1] : memref<2x16x16xf32, #tpu.memory_space<vmem>>, vector<2x16x16xf32>
    %c0_2 = arith.constant 0 : index
    %c0_3 = arith.constant 0 : index
    %c0_4 = arith.constant 0 : index
    %1 = vector.load %arg2[%c0_2, %c0_3, %c0_4] : memref<2x16x32xf32, #tpu.memory_space<vmem>>, vector<2x16x32xf32>
    "tpu.trace_start"() <{level = 10 : i32, message = "bij,bjc->bic"}> : () -> ()
    %cst = arith.constant dense<0.000000e+00> : vector<2x16x32xf32>
    %2 = tpu.matmul %0, %1, %cst {dimension_numbers = #tpu.dot_dimension_numbers<[2], [1], [1], [2], [0, 0, 0, 1, 1, 2], [0], [0]>} : vector<2x16x16xf32>, vector<2x16x32xf32>, vector<2x16x32xf32> -> vector<2x16x32xf32>
    "tpu.trace_stop"() : () -> ()
    %3 = vector.shape_cast %2 : vector<2x16x32xf32> to vector<32x32xf32>
    %c0_5 = arith.constant 0 : index
    %c0_6 = arith.constant 0 : index
    %4 = vector.load %arg3[%c0_5, %c0_6] : memref<32x128xf32, #tpu.memory_space<vmem>>, vector<32x128xf32>
    %cst_7 = arith.constant dense<0.000000e+00> : vector<32x128xf32>
    %5 = tpu.matmul %3, %4, %cst_7 {dimension_numbers = #tpu.dot_dimension_numbers<[1], [0], [0], [1], [0, 0, 1, 1], [], []>} : vector<32x32xf32>, vector<32x128xf32>, vector<32x128xf32> -> vector<32x128xf32>
    %c0_8 = arith.constant 0 : index
    %c0_9 = arith.constant 0 : index
    %6 = vector.load %arg4[%c0_8, %c0_9] : memref<1x128xf32, #tpu.memory_space<vmem>>, vector<1x128xf32>
    %7 = vector.broadcast %6 : vector<1x128xf32> to vector<32x128xf32>
    %8 = arith.addf %5, %7 : vector<32x128xf32>
    %9 = vector.shape_cast %8 : vector<32x128xf32> to vector<2x16x128xf32>
    %c0_10 = arith.constant 0 : index
    %c0_11 = arith.constant 0 : index
    %c0_12 = arith.constant 0 : index
    %10 = vector.load %arg5[%c0_10, %c0_11, %c0_12] : memref<2x16x128xf32, #tpu.memory_space<vmem>>, vector<2x16x128xf32>
    tpu.vector_store %arg5[%c0_10, %c0_11, %c0_12], %9 {strides = array<i32>} : memref<2x16x128xf32, #tpu.memory_space<vmem>>, vector<2x16x128xf32>,
    %cst_13 = arith.constant dense<0.000000e+00> : vector<128xf32>
    %11 = vector.multi_reduction <add>, %8, %cst_13 [0] : vector<32x128xf32> to vector<128xf32>
    %12 = vector.shape_cast %11 : vector<128xf32> to vector<1x128xf32>
    %c0_14 = arith.constant 0 : index
    %c0_15 = arith.constant 0 : index
    %c0_16 = arith.constant 0 : index
    %13 = vector.load %arg6[%c0_14, %c0_15, %c0_16] : memref<1x2x128xf32, #tpu.memory_space<vmem>>, vector<1x1x128xf32>
    %14 = vector.shape_cast %13 : vector<1x1x128xf32> to vector<1x128xf32>
    %15 = vector.shape_cast %12 : vector<1x128xf32> to vector<1x1x128xf32>
    tpu.vector_store %arg6[%c0_14, %c0_15, %c0_16], %15 {strides = array<i32>} : memref<1x2x128xf32, #tpu.memory_space<vmem>>, vector<1x1x128xf32>,
    %16 = arith.mulf %8, %8 : vector<32x128xf32>
    %cst_17 = arith.constant dense<0.000000e+00> : vector<128xf32>
    %17 = vector.multi_reduction <add>, %16, %cst_17 [0] : vector<32x128xf32> to vector<128xf32>
    %18 = vector.shape_cast %17 : vector<128xf32> to vector<1x128xf32>
    %c0_18 = arith.constant 0 : index
    %c1 = arith.constant 1 : index
    %c0_19 = arith.constant 0 : index
    %19 = vector.load %arg6[%c0_18, %c1, %c0_19] : memref<1x2x128xf32, #tpu.memory_space<vmem>>, vector<1x1x128xf32>
    %20 = vector.shape_cast %19 : vector<1x1x128xf32> to vector<1x128xf32>
    %21 = vector.shape_cast %18 : vector<1x128xf32> to vector<1x1x128xf32>
    tpu.vector_store %arg6[%c0_18, %c1, %c0_19], %21 {strides = array<i32>} : memref<1x2x128xf32, #tpu.memory_space<vmem>>, vector<1x1x128xf32>,
    return
  }
  func.func @transform_0(%arg0: i32) -> (i32, i32, i32) {
    %c0_i32 = arith.constant 0 : i32
    %c0_i32_0 = arith.constant 0 : i32
    %c0_i32_1 = arith.constant 0 : i32
    return %arg0, %c0_i32, %c0_i32_0 : i32, i32, i32
  }
  func.func @transform_1(%arg0: i32) -> (i32, i32, i32) {
    %c0_i32 = arith.constant 0 : i32
    %c0_i32_0 = arith.constant 0 : i32
    %c0_i32_1 = arith.constant 0 : i32
    return %arg0, %c0_i32, %c0_i32_0 : i32, i32, i32
  }
  func.func @transform_2(%arg0: i32) -> (i32, i32) {
    %c0_i32 = arith.constant 0 : i32
    %c0_i32_0 = arith.constant 0 : i32
    %c0_i32_1 = arith.constant 0 : i32
    return %c0_i32, %c0_i32_0 : i32, i32
  }
  func.func @transform_3(%arg0: i32) -> (i32, i32) {
    %c0_i32 = arith.constant 0 : i32
    %c0_i32_0 = arith.constant 0 : i32
    %c0_i32_1 = arith.constant 0 : i32
    return %c0_i32, %c0_i32_0 : i32, i32
  }
  func.func @transform_4(%arg0: i32) -> (i32, i32, i32) {
    %c0_i32 = arith.constant 0 : i32
    %c0_i32_0 = arith.constant 0 : i32
    %c0_i32_1 = arith.constant 0 : i32
    return %arg0, %c0_i32, %c0_i32_0 : i32, i32, i32
  }
  func.func @transform_5(%arg0: i32) -> (i32, i32, i32) {
    %c0_i32 = arith.constant 0 : i32
    %c0_i32_0 = arith.constant 0 : i32
    %c0_i32_1 = arith.constant 0 : i32
    return %arg0, %c0_i32, %c0_i32_0 : i32, i32, i32
  }
}

</mosaic_0001>

<llo_original>
// kernel: graph_conv_block.2
$region0: #{graph_conv_block.2}
  #allocation0 [shape = 'u32[]', space=smem, size = 0x4, offset = 0x4, fixed_abs, tag = 'smem constant byte address 0x4 - core index']
  #allocation1 [shape = 'u32[144,128]{1,0:T(1,128)}', space=vmem, size = 0x12000, scoped, tag = 'internal scratch']
  %s0 = inlined_call_operand.hbm [shape: f32[2,16,16], index: 0, kind: input, shape index: {}]
  %s1 = inlined_call_operand.vmem [shape: f32[2,16,32], index: 1, kind: input, shape index: {}]
  %s2 = inlined_call_operand.hbm [shape: f32[32,128], index: 2, kind: input, shape index: {}]
  %s3 = inlined_call_operand.vmem [shape: f32[1,128], index: 3, kind: input, shape index: {}]
  %s4 = inlined_call_operand.hbm [shape: f32[2,16,128], index: 4, kind: output, shape index: {0}]
  %s5 = inlined_call_operand.vmem [shape: f32[1,2,128], index: 5, kind: output, shape index: {1}]
  %6 = xla_tuple %s4, %s5
  %s7 = sld [smem:[#allocation0]]
  $region42: #{graph_conv_block.2} parent=0
    _
  %s9 = ssub.s32 1, %s7
  %s10 = scalar_select 0, %s9, %s7
  $region1: #{graph_conv_block.2} parent=0
    #allocation2 [shape = 'u8[16384]{0}', space=vmem, size = 0x4000, scoped, tag = 'input window, operand 0, single buffered']
    #allocation3 [shape = 's32[1]{0}', space=sflag, size = 0x4, scoped, tag = 'scoped memory for graph_conv_block.2']
    #allocation4 [shape = 's32[1]{0}', space=sflag, size = 0x4, scoped, tag = 'scoped memory for graph_conv_block.2']
    #allocation5 [shape = 'u8[16384]{0}', space=vmem, size = 0x4000, scoped, tag = 'input window, operand 2, single buffered']
    #allocation6 [shape = 's32[1]{0}', space=sflag, size = 0x4, scoped, tag = 'scoped memory for graph_conv_block.2']
    #allocation7 [shape = 'u8[16384]{0}', space=vmem, size = 0x4000, scoped, tag = 'output window, operand 0, single buffered']
    %11 = vsyncpa [#allocation3], 0
    %12 = vsyncpa [#allocation6], 0
    %13 = vsyncpa [#allocation4], 0
    // Predicated region
    $region2: #{graph_conv_block.2} parent=1 // pred_check
      _
    $region3: #{graph_conv_block.2} parent=1 // pred_check_branch
      %15 = sbr.rel (0) target = $region5
    $region4: #{graph_conv_block.2} parent=1 // pred_region
      %s17 = ssub.s32 512, 512
      %18 = vsyncadd [#allocation3], %s17
      %s19 = sshll.u32 [#allocation2], 4
      %s20 = int_to_ptr.vmem [resolvable:$true] %s19
      %25 = dma.hbm_to_vmem [thread:$0]  %s0, 512, %s20, [#allocation3], 128, 128, 8
    $region5: #{graph_conv_block.2} parent=1 // pred_fallthru
      _
    // Predicated region
    $region6: #{graph_conv_block.2} parent=1 // pred_check
      _
    $region7: #{graph_conv_block.2} parent=1 // pred_check_branch
      %27 = sbr.rel (0) target = $region9
    $region8: #{graph_conv_block.2} parent=1 // pred_region
      _
    $region9: #{graph_conv_block.2} parent=1 // pred_fallthru
      _
    // Predicated region
    $region10: #{graph_conv_block.2} parent=1 // pred_check
      _
    $region11: #{graph_conv_block.2} parent=1 // pred_check_branch
      %29 = sbr.rel (0) target = $region13
    $region12: #{graph_conv_block.2} parent=1 // pred_region
      %s31 = ssub.s32 512, 512
      %32 = vsyncadd [#allocation6], %s31
      %s33 = sshll.u32 [#allocation5], 4
      %s34 = int_to_ptr.vmem [resolvable:$true] %s33
      %39 = dma.hbm_to_vmem [thread:$0]  %s2, 512, %s34, [#allocation6], 128, 128, 8
    $region13: #{graph_conv_block.2} parent=1 // pred_fallthru
      _
    // Predicated region
    $region14: #{graph_conv_block.2} parent=1 // pred_check
      _
    $region15: #{graph_conv_block.2} parent=1 // pred_check_branch
      %41 = sbr.rel (0) target = $region17
    $region16: #{graph_conv_block.2} parent=1 // pred_region
      _
    $region17: #{graph_conv_block.2} parent=1 // pred_fallthru
      _
    // Predicated region
    $region18: #{graph_conv_block.2} parent=1 // pred_check
      _
    $region19: #{graph_conv_block.2} parent=1 // pred_check_branch
      %43 = sbr.rel (0) target = $region21
    $region20: #{graph_conv_block.2} parent=1 // pred_region
      %44 = dma.done [#allocation3], 512
    $region21: #{graph_conv_block.2} parent=1 // pred_fallthru
      _
    // Predicated region
    $region22: #{graph_conv_block.2} parent=1 // pred_check
      _
    $region23: #{graph_conv_block.2} parent=1 // pred_check_branch
      %46 = sbr.rel (0) target = $region25
    $region24: #{graph_conv_block.2} parent=1 // pred_region
      %47 = dma.done [#allocation6], 512
    $region25: #{graph_conv_block.2} parent=1 // pred_fallthru
      _
    %v48 = vld [vmem:[#allocation2] sm:$0xff]
    %v49 = vld [vmem:[#allocation2 + $0x8] sm:$0xff]
    %v50 = vld [vmem:[#allocation2 + $0x10] sm:$0xff]
    %v51 = vld [vmem:[#allocation2 + $0x18] sm:$0xff]
    %v52 = vld [vmem:[%s1] sm:$0xff]
    %v53 = vld [vmem:[%s1 + $0x8] sm:$0xff]
    %v54 = vld [vmem:[%s1 + $0x10] sm:$0xff]
    %v55 = vld [vmem:[%s1 + $0x18] sm:$0xff]
    %vm56 = vcmask 130048
    %v58 = vsel %vm56, %v48, 0
    %v61 = vsel %vm56, %v49, 0
    %63 = vmatprep.subr.mxu0 0.0
    %64 = vmatpush1.msra.mxu0 %v52
    %65 = vmatprep.subr.mxu0 0.0
    %66 = vmatpush1.msra.mxu0 %v53
    %67 = vmatprep.subr.mxu0 0.0
    %68 = vmatpush1.msra.mxu0 0.0
    %69 = vmatprep.subr.mxu0 0.0
    %70 = vmatpush1.msra.mxu0 0.0
    %71 = vmatprep.subr.mxu0 0.0
    %72 = vmatpush1.msra.mxu0 0.0
    %73 = vmatprep.subr.mxu0 0.0
    %74 = vmatpush1.msra.mxu0 0.0
    %75 = vmatprep.subr.mxu0 0.0
    %76 = vmatpush1.msra.mxu0 0.0
    %77 = vmatprep.subr.mxu0 0.0
    %78 = vmatpush1.msra.mxu0 0.0
    %79 = vmatprep.subr.mxu0 0.0
    %80 = vmatpush1.msra.mxu0 0.0
    %81 = vmatprep.subr.mxu0 0.0
    %82 = vmatpush1.msra.mxu0 0.0
    %83 = vmatprep.subr.mxu0 0.0
    %84 = vmatpush1.msra.mxu0 0.0
    %85 = vmatprep.subr.mxu0 0.0
    %86 = vmatpush1.msra.mxu0 0.0
    %87 = vmatprep.subr.mxu0 0.0
    %88 = vmatpush1.msra.mxu0 0.0
    %89 = vmatprep.subr.mxu0 0.0
    %90 = vmatpush1.msra.mxu0 0.0
    %91 = vmatprep.subr.mxu0 0.0
    %92 = vmatpush1.msra.mxu0 0.0
    %93 = vmatprep.subr.mxu0 0.0
    %94 = vmatpush1.msra.mxu0 0.0
    %95 = vmatprep.subr.mxu0 0.0
    %96 = vmatpush1.msra.mxu0 0.0
    %97 = vmatprep.subr.mxu0 0.0
    %98 = vmatpush1.msra.mxu0 0.0
    %99 = vmatprep.subr.mxu0 0.0
    %100 = vmatpush1.msra.mxu0 0.0
    %101 = vmatprep.subr.mxu0 0.0
    %102 = vmatpush1.msra.mxu0 0.0
    %103 = vmatprep.subr.mxu0 0.0
    %104 = vmatpush1.msra.mxu0 0.0
    %105 = vmatprep.subr.mxu0 0.0
    %106 = vmatpush1.msra.mxu0 0.0
    %107 = vmatprep.subr.mxu0 0.0
    %108 = vmatpush1.msra.mxu0 0.0
    %109 = vmatprep.subr.mxu0 0.0
    %110 = vmatpush1.msra.mxu0 0.0
    %111 = vmatprep.subr.mxu0 0.0
    %112 = vmatpush1.msra.mxu0 0.0
    %113 = vmatprep.subr.mxu0 0.0
    %114 = vmatpush1.msra.mxu0 0.0
    %115 = vmatprep.subr.mxu0 0.0
    %116 = vmatpush1.msra.mxu0 0.0
    %117 = vmatprep.subr.mxu0 0.0
    %118 = vmatpush1.msra.mxu0 0.0
    %119 = vmatprep.subr.mxu0 0.0
    %120 = vmatpush1.msra.mxu0 0.0
    %121 = vmatprep.subr.mxu0 0.0
    %122 = vmatpush1.msra.mxu0 0.0
    %123 = vmatprep.subr.mxu0 0.0
    %124 = vmatpush1.msra.mxu0 0.0
    %125 = vmatprep.subr.mxu0 0.0
    %126 = vmatpush1.msra.mxu0 0.0
    %127 = vmatprep.mubr.f32.mxu0 0.0
    %128 = vmatmul.mubr.f32.gmra.mrb[0].mxu0 %v58
    %v129 = vpop.f32.mrb[0].mxu0
    %v130 = vadd.f32 0.0, %v129
    %v131 = vpop.f32.mrb[0].mxu0
    %132 = vmatprep.mubr.f32.mxu0 0.0
    %133 = vmatmul.mubr.f32.gmra.mrb[0].mxu0 %v61
    %v134 = vpop.f32.mrb[0].mxu0
    %v135 = vadd.f32 0.0, %v134
    %v136 = vpop.f32.mrb[0].mxu0
    %137 = vdwg.mxu0
    %v139 = vsel %vm56, %v50, 0
    %v142 = vsel %vm56, %v51, 0
    %144 = vmatprep.subr.mxu0 0.0
    %145 = vmatpush1.msra.mxu0 %v54
    %146 = vmatprep.subr.mxu0 0.0
    %147 = vmatpush1.msra.mxu0 %v55
    %148 = vmatprep.subr.mxu0 0.0
    %149 = vmatpush1.msra.mxu0 0.0
    %150 = vmatprep.subr.mxu0 0.0
    %151 = vmatpush1.msra.mxu0 0.0
    %152 = vmatprep.subr.mxu0 0.0
    %153 = vmatpush1.msra.mxu0 0.0
    %154 = vmatprep.subr.mxu0 0.0
    %155 = vmatpush1.msra.mxu0 0.0
    %156 = vmatprep.subr.mxu0 0.0
    %157 = vmatpush1.msra.mxu0 0.0
    %158 = vmatprep.subr.mxu0 0.0
    %159 = vmatpush1.msra.mxu0 0.0
    %160 = vmatprep.subr.mxu0 0.0
    %161 = vmatpush1.msra.mxu0 0.0
    %162 = vmatprep.subr.mxu0 0.0
    %163 = vmatpush1.msra.mxu0 0.0
    %164 = vmatprep.subr.mxu0 0.0
    %165 = vmatpush1.msra.mxu0 0.0
    %166 = vmatprep.subr.mxu0 0.0
    %167 = vmatpush1.msra.mxu0 0.0
    %168 = vmatprep.subr.mxu0 0.0
    %169 = vmatpush1.msra.mxu0 0.0
    %170 = vmatprep.subr.mxu0 0.0
    %171 = vmatpush1.msra.mxu0 0.0
    %172 = vmatprep.subr.mxu0 0.0
    %173 = vmatpush1.msra.mxu0 0.0
    %174 = vmatprep.subr.mxu0 0.0
    %175 = vmatpush1.msra.mxu0 0.0
    %176 = vmatprep.subr.mxu0 0.0
    %177 = vmatpush1.msra.mxu0 0.0
    %178 = vmatprep.subr.mxu0 0.0
    %179 = vmatpush1.msra.mxu0 0.0
    %180 = vmatprep.subr.mxu0 0.0
    %181 = vmatpush1.msra.mxu0 0.0
    %182 = vmatprep.subr.mxu0 0.0
    %183 = vmatpush1.msra.mxu0 0.0
    %184 = vmatprep.subr.mxu0 0.0
    %185 = vmatpush1.msra.mxu0 0.0
    %186 = vmatprep.subr.mxu0 0.0
    %187 = vmatpush1.msra.mxu0 0.0
    %188 = vmatprep.subr.mxu0 0.0
    %189 = vmatpush1.msra.mxu0 0.0
    %190 = vmatprep.subr.mxu0 0.0
    %191 = vmatpush1.msra.mxu0 0.0
    %192 = vmatprep.subr.mxu0 0.0
    %193 = vmatpush1.msra.mxu0 0.0
    %194 = vmatprep.subr.mxu0 0.0
    %195 = vmatpush1.msra.mxu0 0.0
    %196 = vmatprep.subr.mxu0 0.0
    %197 = vmatpush1.msra.mxu0 0.0
    %198 = vmatprep.subr.mxu0 0.0
    %199 = vmatpush1.msra.mxu0 0.0
    %200 = vmatprep.subr.mxu0 0.0
    %201 = vmatpush1.msra.mxu0 0.0
    %202 = vmatprep.subr.mxu0 0.0
    %203 = vmatpush1.msra.mxu0 0.0
    %204 = vmatprep.subr.mxu0 0.0
    %205 = vmatpush1.msra.mxu0 0.0
    %206 = vmatprep.subr.mxu0 0.0
    %207 = vmatpush1.msra.mxu0 0.0
    %208 = vmatprep.mubr.f32.mxu0 0.0
    %209 = vmatmul.mubr.f32.gmra.mrb[0].mxu0 %v139
    %v210 = vpop.f32.mrb[0].mxu0
    %v211 = vadd.f32 0.0, %v210
    %v212 = vpop.f32.mrb[0].mxu0
    %213 = vmatprep.mubr.f32.mxu0 0.0
    %214 = vmatmul.mubr.f32.gmra.mrb[0].mxu0 %v142
    %v215 = vpop.f32.mrb[0].mxu0
    %v216 = vadd.f32 0.0, %v215
    %v217 = vpop.f32.mrb[0].mxu0
    %218 = vdwg.mxu0
    %v219 = vld [vmem:[#allocation5] sm:$0xff]
    %v220 = vld [vmem:[#allocation5 + $0x8] sm:$0xff]
    %v221 = vld [vmem:[#allocation5 + $0x10] sm:$0xff]
    %v222 = vld [vmem:[#allocation5 + $0x18] sm:$0xff]
    %v223 = vld [vmem:[%s3] sm:$0x1]
    %v225 = vlaneseq
    %v226 = vshrl.u32 %v225, 7
    %v227 = vsub.s32 0, %v226
    %v228 = vrot.slane %v223, %v227
    %vm230 = vcmask 261120
    %v232 = vsel %vm230, %v130, 0
    %v235 = vsel %vm230, %v135, 0
    %v238 = vsel %vm230, %v211, 0
    %v241 = vsel %vm230, %v216, 0
    %243 = vmatprep.subr.mxu0 0.0
    %244 = vmatpush1.msra.mxu0 %v219
    %245 = vmatprep.subr.mxu0 0.0
    %246 = vmatpush1.msra.mxu0 %v220
    %247 = vmatprep.subr.mxu0 0.0
    %248 = vmatpush1.msra.mxu0 %v221
    %249 = vmatprep.subr.mxu0 0.0
    %250 = vmatpush1.msra.mxu0 %v222
    %251 = vmatprep.subr.mxu0 0.0
    %252 = vmatpush1.msra.mxu0 0.0
    %253 = vmatprep.subr.mxu0 0.0
    %254 = vmatpush1.msra.mxu0 0.0
    %255 = vmatprep.subr.mxu0 0.0
    %256 = vmatpush1.msra.mxu0 0.0
    %257 = vmatprep.subr.mxu0 0.0
    %258 = vmatpush1.msra.mxu0 0.0
    %259 = vmatprep.subr.mxu0 0.0
    %260 = vmatpush1.msra.mxu0 0.0
    %261 = vmatprep.subr.mxu0 0.0
    %262 = vmatpush1.msra.mxu0 0.0
    %263 = vmatprep.subr.mxu0 0.0
    %264 = vmatpush1.msra.mxu0 0.0
    %265 = vmatprep.subr.mxu0 0.0
    %266 = vmatpush1.msra.mxu0 0.0
    %267 = vmatprep.subr.mxu0 0.0
    %268 = vmatpush1.msra.mxu0 0.0
    %269 = vmatprep.subr.mxu0 0.0
    %270 = vmatpush1.msra.mxu0 0.0
    %271 = vmatprep.subr.mxu0 0.0
    %272 = vmatpush1.msra.mxu0 0.0
    %273 = vmatprep.subr.mxu0 0.0
    %274 = vmatpush1.msra.mxu0 0.0
    %275 = vmatprep.subr.mxu0 0.0
    %276 = vmatpush1.msra.mxu0 0.0
    %277 = vmatprep.subr.mxu0 0.0
    %278 = vmatpush1.msra.mxu0 0.0
    %279 = vmatprep.subr.mxu0 0.0
    %280 = vmatpush1.msra.mxu0 0.0
    %281 = vmatprep.subr.mxu0 0.0
    %282 = vmatpush1.msra.mxu0 0.0
    %283 = vmatprep.subr.mxu0 0.0
    %284 = vmatpush1.msra.mxu0 0.0
    %285 = vmatprep.subr.mxu0 0.0
    %286 = vmatpush1.msra.mxu0 0.0
    %287 = vmatprep.subr.mxu0 0.0
    %288 = vmatpush1.msra.mxu0 0.0
    %289 = vmatprep.subr.mxu0 0.0
    %290 = vmatpush1.msra.mxu0 0.0
    %291 = vmatprep.subr.mxu0 0.0
    %292 = vmatpush1.msra.mxu0 0.0
    %293 = vmatprep.subr.mxu0 0.0
    %294 = vmatpush1.msra.mxu0 0.0
    %295 = vmatprep.subr.mxu0 0.0
    %296 = vmatpush1.msra.mxu0 0.0
    %297 = vmatprep.subr.mxu0 0.0
    %298 = vmatpush1.msra.mxu0 0.0
    %299 = vmatprep.subr.mxu0 0.0
    %300 = vmatpush1.msra.mxu0 0.0
    %301 = vmatprep.subr.mxu0 0.0
    %302 = vmatpush1.msra.mxu0 0.0
    %303 = vmatprep.subr.mxu0 0.0
    %304 = vmatpush1.msra.mxu0 0.0
    %305 = vmatprep.subr.mxu0 0.0
    %306 = vmatpush1.msra.mxu0 0.0
    %307 = vmatprep.mubr.f32.mxu0 0.0
    %308 = vmatmul.mubr.f32.gmra.mrb[0].mxu0 %v232
    %v309 = vpop.f32.mrb[0].mxu0
    %v310 = vadd.f32 %v228, %v309
    %v311 = vpop.f32.mrb[0].mxu0
    %312 = vmatprep.mubr.f32.mxu0 0.0
    %313 = vmatmul.mubr.f32.gmra.mrb[0].mxu0 %v235
    %v314 = vpop.f32.mrb[0].mxu0
    %v315 = vadd.f32 %v228, %v314
    %v316 = vpop.f32.mrb[0].mxu0
    %317 = vmatprep.mubr.f32.mxu0 0.0
    %318 = vmatmul.mubr.f32.gmra.mrb[0].mxu0 %v238
    %v319 = vpop.f32.mrb[0].mxu0
    %v320 = vadd.f32 %v228, %v319
    %v321 = vpop.f32.mrb[0].mxu0
    %322 = vmatprep.mubr.f32.mxu0 0.0
    %323 = vmatmul.mubr.f32.gmra.mrb[0].mxu0 %v241
    %v324 = vpop.f32.mrb[0].mxu0
    %v325 = vadd.f32 %v228, %v324
    %v326 = vpop.f32.mrb[0].mxu0
    %327 = vdwg.mxu0
    %328 = vst [vmem:[#allocation7] sm:$0xff] %v310
    %329 = vst [vmem:[#allocation7 + $0x8] sm:$0xff] %v315
    %330 = vst [vmem:[#allocation7 + $0x10] sm:$0xff] %v320
    %331 = vst [vmem:[#allocation7 + $0x18] sm:$0xff] %v325
    %v332 = vadd.f32 %v310, %v315
    %v333 = vadd.f32 %v332, %v320
    %v334 = vadd.f32 %v333, %v325
    %v335 = vrot.slane %v334, 4
    %v336 = vadd.f32 %v334, %v335
    %v337 = vrot.slane %v336, 2
    %v338 = vadd.f32 %v336, %v337
    %v339 = vrot.slane %v338, 1
    %v340 = vadd.f32 %v338, %v339
    %341 = vst [vmem:[%s5] sm:$0x1] %v340
    %v342 = vmul.f32 %v310, %v310
    %v343 = vmul.f32 %v315, %v315
    %v344 = vmul.f32 %v320, %v320
    %v345 = vmul.f32 %v325, %v325
    %v346 = vadd.f32 %v342, %v343
    %v347 = vadd.f32 %v346, %v344
    %v348 = vadd.f32 %v347, %v345
    %v349 = vrot.slane %v348, 4
    %v350 = vadd.f32 %v348, %v349
    %v351 = vrot.slane %v350, 2
    %v352 = vadd.f32 %v350, %v351
    %v353 = vrot.slane %v352, 1
    %v354 = vadd.f32 %v352, %v353
    %355 = vst [vmem:[%s5 + $0x1] sm:$0x1] %v354
    // Predicated region
    $region26: #{graph_conv_block.2} parent=1 // pred_check
      _
    $region27: #{graph_conv_block.2} parent=1 // pred_check_branch
      %357 = sbr.rel (0) target = $region29
    $region28: #{graph_conv_block.2} parent=1 // pred_region
      %s359 = ssub.s32 512, 512
      %360 = vsyncadd [#allocation4], %s359
      %s361 = sshll.u32 [#allocation7], 4
      %s362 = int_to_ptr.vmem [resolvable:$true] %s361
      %367 = dma.vmem_to_hbm [thread:$0]  %s362, 512, %s4, [#allocation4], 128, 128, 8
    $region29: #{graph_conv_block.2} parent=1 // pred_fallthru
      _
    // Predicated region
    $region30: #{graph_conv_block.2} parent=1 // pred_check
      _
    $region31: #{graph_conv_block.2} parent=1 // pred_check_branch
      %369 = sbr.rel (0) target = $region33
    $region32: #{graph_conv_block.2} parent=1 // pred_region
      _
    $region33: #{graph_conv_block.2} parent=1 // pred_fallthru
      _
    // Predicated region
    $region34: #{graph_conv_block.2} parent=1 // pred_check
      _
    $region35: #{graph_conv_block.2} parent=1 // pred_check_branch
      %371 = sbr.rel (0) target = $region37
    $region36: #{graph_conv_block.2} parent=1 // pred_region
      %372 = dma.done [#allocation4], 512
    $region37: #{graph_conv_block.2} parent=1 // pred_fallthru
      _
    // Predicated region
    $region38: #{graph_conv_block.2} parent=1 // pred_check
      _
    $region39: #{graph_conv_block.2} parent=1 // pred_check_branch
      %374 = sbr.rel (0) target = $region41
    $region40: #{graph_conv_block.2} parent=1 // pred_region
      _
    $region41: #{graph_conv_block.2} parent=1 // pred_fallthru
      _
    %375 = vsyncpa [#allocation3], 1
    %376 = vsyncpa [#allocation6], 1
    %377 = vsyncpa [#allocation4], 1

// kernel: graph_conv_block.3
$region0: #{graph_conv_block.3}
  #allocation0 [shape = 'u32[]', space=smem, size = 0x4, offset = 0x4, fixed_abs, tag = 'smem constant byte address 0x4 - core index']
  #allocation1 [shape = 'u32[144,128]{1,0:T(1,128)}', space=vmem, size = 0x12000, scoped, tag = 'internal scratch']
  %s0 = inlined_call_operand.vmem [shape: f32[1,128], index: 0, kind: input, shape index: {}]
  %s1 = inlined_call_operand.vmem [shape: f32[1,128], index: 1, kind: input, shape index: {}]
  %s2 = inlined_call_operand.vmem [shape: f32[32,128], index: 2, kind: input, shape index: {}]
  %s3 = inlined_call_operand.vmem [shape: f32[1,128], index: 3, kind: input, shape index: {}]
  %s4 = inlined_call_operand.vmem [shape: f32[2,16,32], index: 4, kind: input, shape index: {}]
  %s5 = inlined_call_operand.hbm [shape: f32[2,16,128], index: 5, kind: input, shape index: {}, may-alias: {5,6}]
  %s6 = inlined_call_operand.hbm [shape: f32[2,16,128], index: 6, kind: output, shape index: {}, may-alias: {5,6}]
  %s7 = sld [smem:[#allocation0]]
  $region38: #{graph_conv_block.3} parent=0
    _
  %s9 = ssub.s32 1, %s7
  %s10 = scalar_select 0, %s9, %s7
  $region1: #{graph_conv_block.3} parent=0
    #allocation2 [shape = 'u8[16384]{0}', space=vmem, size = 0x4000, scoped, tag = 'input window, operand 5, single buffered']
    #allocation3 [shape = 's32[1]{0}', space=sflag, size = 0x4, scoped, tag = 'scoped memory for graph_conv_block.3']
    #allocation4 [shape = 's32[1]{0}', space=sflag, size = 0x4, scoped, tag = 'scoped memory for graph_conv_block.3']
    #allocation5 [shape = 'u8[16384]{0}', space=vmem, size = 0x4000, scoped, tag = 'output window, operand 0, single buffered']
    %11 = vsyncpa [#allocation3], 0
    %12 = vsyncpa [#allocation4], 0
    // Predicated region
    $region2: #{graph_conv_block.3} parent=1 // pred_check
      _
    $region3: #{graph_conv_block.3} parent=1 // pred_check_branch
      %14 = sbr.rel (0) target = $region5
    $region4: #{graph_conv_block.3} parent=1 // pred_region
      _
    $region5: #{graph_conv_block.3} parent=1 // pred_fallthru
      _
    // Predicated region
    $region6: #{graph_conv_block.3} parent=1 // pred_check
      _
    $region7: #{graph_conv_block.3} parent=1 // pred_check_branch
      %16 = sbr.rel (0) target = $region9
    $region8: #{graph_conv_block.3} parent=1 // pred_region
      _
    $region9: #{graph_conv_block.3} parent=1 // pred_fallthru
      _
    // Predicated region
    $region10: #{graph_conv_block.3} parent=1 // pred_check
      _
    $region11: #{graph_conv_block.3} parent=1 // pred_check_branch
      %18 = sbr.rel (0) target = $region13
    $region12: #{graph_conv_block.3} parent=1 // pred_region
      _
    $region13: #{graph_conv_block.3} parent=1 // pred_fallthru
      _
    // Predicated region
    $region14: #{graph_conv_block.3} parent=1 // pred_check
      _
    $region15: #{graph_conv_block.3} parent=1 // pred_check_branch
      %20 = sbr.rel (0) target = $region17
    $region16: #{graph_conv_block.3} parent=1 // pred_region
      _
    $region17: #{graph_conv_block.3} parent=1 // pred_fallthru
      _
    // Predicated region
    $region18: #{graph_conv_block.3} parent=1 // pred_check
      _
    $region19: #{graph_conv_block.3} parent=1 // pred_check_branch
      %22 = sbr.rel (0) target = $region21
    $region20: #{graph_conv_block.3} parent=1 // pred_region
      _
    $region21: #{graph_conv_block.3} parent=1 // pred_fallthru
      _
    // Predicated region
    $region22: #{graph_conv_block.3} parent=1 // pred_check
      _
    $region23: #{graph_conv_block.3} parent=1 // pred_check_branch
      %24 = sbr.rel (0) target = $region25
    $region24: #{graph_conv_block.3} parent=1 // pred_region
      %s26 = ssub.s32 512, 512
      %27 = vsyncadd [#allocation3], %s26
      %s28 = sshll.u32 [#allocation2], 4
      %s29 = int_to_ptr.vmem [resolvable:$true] %s28
      %34 = dma.hbm_to_vmem [thread:$0]  %s5, 512, %s29, [#allocation3], 128, 128, 8
    $region25: #{graph_conv_block.3} parent=1 // pred_fallthru
      _
    // Predicated region
    $region26: #{graph_conv_block.3} parent=1 // pred_check
      _
    $region27: #{graph_conv_block.3} parent=1 // pred_check_branch
      %36 = sbr.rel (0) target = $region29
    $region28: #{graph_conv_block.3} parent=1 // pred_region
      %37 = dma.done [#allocation3], 512
    $region29: #{graph_conv_block.3} parent=1 // pred_fallthru
      _
    %v38 = vld [vmem:[%s4] sm:$0xff]
    %v39 = vld [vmem:[%s4 + $0x8] sm:$0xff]
    %v40 = vld [vmem:[%s4 + $0x10] sm:$0xff]
    %v41 = vld [vmem:[%s4 + $0x18] sm:$0xff]
    %v42 = vld [vmem:[%s2] sm:$0xff]
    %v43 = vld [vmem:[%s2 + $0x8] sm:$0xff]
    %v44 = vld [vmem:[%s2 + $0x10] sm:$0xff]
    %v45 = vld [vmem:[%s2 + $0x18] sm:$0xff]
    %v46 = vld [vmem:[%s3] sm:$0x1]
    %v48 = vlaneseq
    %v49 = vshrl.u32 %v48, 7
    %v50 = vsub.s32 0, %v49
    %v51 = vrot.slane %v46, %v50
    %vm53 = vcmask 261120
    %v55 = vsel %vm53, %v38, 0
    %v58 = vsel %vm53, %v39, 0
    %v61 = vsel %vm53, %v40, 0
    %v64 = vsel %vm53, %v41, 0
    %66 = vmatprep.subr.mxu0 0.0
    %67 = vmatpush1.msra.mxu0 %v42
    %68 = vmatprep.subr.mxu0 0.0
    %69 = vmatpush1.msra.mxu0 %v43
    %70 = vmatprep.subr.mxu0 0.0
    %71 = vmatpush1.msra.mxu0 %v44
    %72 = vmatprep.subr.mxu0 0.0
    %73 = vmatpush1.msra.mxu0 %v45
    %74 = vmatprep.subr.mxu0 0.0
    %75 = vmatpush1.msra.mxu0 0.0
    %76 = vmatprep.subr.mxu0 0.0
    %77 = vmatpush1.msra.mxu0 0.0
    %78 = vmatprep.subr.mxu0 0.0
    %79 = vmatpush1.msra.mxu0 0.0
    %80 = vmatprep.subr.mxu0 0.0
    %81 = vmatpush1.msra.mxu0 0.0
    %82 = vmatprep.subr.mxu0 0.0
    %83 = vmatpush1.msra.mxu0 0.0
    %84 = vmatprep.subr.mxu0 0.0
    %85 = vmatpush1.msra.mxu0 0.0
    %86 = vmatprep.subr.mxu0 0.0
    %87 = vmatpush1.msra.mxu0 0.0
    %88 = vmatprep.subr.mxu0 0.0
    %89 = vmatpush1.msra.mxu0 0.0
    %90 = vmatprep.subr.mxu0 0.0
    %91 = vmatpush1.msra.mxu0 0.0
    %92 = vmatprep.subr.mxu0 0.0
    %93 = vmatpush1.msra.mxu0 0.0
    %94 = vmatprep.subr.mxu0 0.0
    %95 = vmatpush1.msra.mxu0 0.0
    %96 = vmatprep.subr.mxu0 0.0
    %97 = vmatpush1.msra.mxu0 0.0
    %98 = vmatprep.subr.mxu0 0.0
    %99 = vmatpush1.msra.mxu0 0.0
    %100 = vmatprep.subr.mxu0 0.0
    %101 = vmatpush1.msra.mxu0 0.0
    %102 = vmatprep.subr.mxu0 0.0
    %103 = vmatpush1.msra.mxu0 0.0
    %104 = vmatprep.subr.mxu0 0.0
    %105 = vmatpush1.msra.mxu0 0.0
    %106 = vmatprep.subr.mxu0 0.0
    %107 = vmatpush1.msra.mxu0 0.0
    %108 = vmatprep.subr.mxu0 0.0
    %109 = vmatpush1.msra.mxu0 0.0
    %110 = vmatprep.subr.mxu0 0.0
    %111 = vmatpush1.msra.mxu0 0.0
    %112 = vmatprep.subr.mxu0 0.0
    %113 = vmatpush1.msra.mxu0 0.0
    %114 = vmatprep.subr.mxu0 0.0
    %115 = vmatpush1.msra.mxu0 0.0
    %116 = vmatprep.subr.mxu0 0.0
    %117 = vmatpush1.msra.mxu0 0.0
    %118 = vmatprep.subr.mxu0 0.0
    %119 = vmatpush1.msra.mxu0 0.0
    %120 = vmatprep.subr.mxu0 0.0
    %121 = vmatpush1.msra.mxu0 0.0
    %122 = vmatprep.subr.mxu0 0.0
    %123 = vmatpush1.msra.mxu0 0.0
    %124 = vmatprep.subr.mxu0 0.0
    %125 = vmatpush1.msra.mxu0 0.0
    %126 = vmatprep.subr.mxu0 0.0
    %127 = vmatpush1.msra.mxu0 0.0
    %128 = vmatprep.subr.mxu0 0.0
    %129 = vmatpush1.msra.mxu0 0.0
    %130 = vmatprep.mubr.f32.mxu0 0.0
    %131 = vmatmul.mubr.f32.gmra.mrb[0].mxu0 %v55
    %v132 = vpop.f32.mrb[0].mxu0
    %v133 = vadd.f32 %v51, %v132
    %v134 = vpop.f32.mrb[0].mxu0
    %135 = vmatprep.mubr.f32.mxu0 0.0
    %136 = vmatmul.mubr.f32.gmra.mrb[0].mxu0 %v58
    %v137 = vpop.f32.mrb[0].mxu0
    %v138 = vadd.f32 %v51, %v137
    %v139 = vpop.f32.mrb[0].mxu0
    %140 = vmatprep.mubr.f32.mxu0 0.0
    %141 = vmatmul.mubr.f32.gmra.mrb[0].mxu0 %v61
    %v142 = vpop.f32.mrb[0].mxu0
    %v143 = vadd.f32 %v51, %v142
    %v144 = vpop.f32.mrb[0].mxu0
    %145 = vmatprep.mubr.f32.mxu0 0.0
    %146 = vmatmul.mubr.f32.gmra.mrb[0].mxu0 %v64
    %v147 = vpop.f32.mrb[0].mxu0
    %v148 = vadd.f32 %v51, %v147
    %v149 = vpop.f32.mrb[0].mxu0
    %150 = vdwg.mxu0
    %v151 = vld [vmem:[#allocation2] sm:$0xff]
    %v152 = vld [vmem:[#allocation2 + $0x8] sm:$0xff]
    %v153 = vld [vmem:[#allocation2 + $0x10] sm:$0xff]
    %v154 = vld [vmem:[#allocation2 + $0x18] sm:$0xff]
    %v155 = vld [vmem:[%s0] sm:$0x1]
    %v157 = vlaneseq
    %v158 = vshrl.u32 %v157, 7
    %v159 = vsub.s32 0, %v158
    %v160 = vrot.slane %v155, %v159
    %v162 = vmul.f32 %v151, %v160
    %v163 = vmul.f32 %v152, %v160
    %v164 = vmul.f32 %v153, %v160
    %v165 = vmul.f32 %v154, %v160
    %v166 = vld [vmem:[%s1] sm:$0x1]
    %v168 = vlaneseq
    %v169 = vshrl.u32 %v168, 7
    %v170 = vsub.s32 0, %v169
    %v171 = vrot.slane %v166, %v170
    %v173 = vadd.f32 %v162, %v171
    %v174 = vadd.f32 %v163, %v171
    %v175 = vadd.f32 %v164, %v171
    %v176 = vadd.f32 %v165, %v171
    %v177 = vmax.f32 %v173, 0.0
    %v178 = vmax.f32 %v174, 0.0
    %v179 = vmax.f32 %v175, 0.0
    %v180 = vmax.f32 %v176, 0.0
    %v181 = vadd.f32 %v177, %v133
    %v182 = vadd.f32 %v178, %v138
    %v183 = vadd.f32 %v179, %v143
    %v184 = vadd.f32 %v180, %v148
    %185 = vst [vmem:[#allocation5] sm:$0xff] %v181
    %186 = vst [vmem:[#allocation5 + $0x8] sm:$0xff] %v182
    %187 = vst [vmem:[#allocation5 + $0x10] sm:$0xff] %v183
    %188 = vst [vmem:[#allocation5 + $0x18] sm:$0xff] %v184
    // Predicated region
    $region30: #{graph_conv_block.3} parent=1 // pred_check
      _
    $region31: #{graph_conv_block.3} parent=1 // pred_check_branch
      %190 = sbr.rel (0) target = $region33
    $region32: #{graph_conv_block.3} parent=1 // pred_region
      %s192 = ssub.s32 512, 512
      %193 = vsyncadd [#allocation4], %s192
      %s194 = sshll.u32 [#allocation5], 4
      %s195 = int_to_ptr.vmem [resolvable:$true] %s194
      %200 = dma.vmem_to_hbm [thread:$0]  %s195, 512, %s6, [#allocation4], 128, 128, 8
    $region33: #{graph_conv_block.3} parent=1 // pred_fallthru
      _
    // Predicated region
    $region34: #{graph_conv_block.3} parent=1 // pred_check
      _
    $region35: #{graph_conv_block.3} parent=1 // pred_check_branch
      %202 = sbr.rel (0) target = $region37
    $region36: #{graph_conv_block.3} parent=1 // pred_region
      %203 = dma.done [#allocation4], 512
    $region37: #{graph_conv_block.3} parent=1 // pred_fallthru
      _
    %204 = vsyncpa [#allocation3], 1
    %205 = vsyncpa [#allocation4], 1

</llo_original>
